<compile_context>
chip_gen: v7x
topology: tpu7x:2x2x1
jax: 0.10.0
libtpu: 0.0.40
codegen_flags: <defaults>
</compile_context>

<pallas_src>
import math
from functools import partial

import jax
import jax.numpy as jnp
import numpy as np
from jax.experimental import pallas as pl
from jax.experimental.pallas import tpu as pltpu

# ----- "module" hyperparameters (deterministic, in-script) ------------------
QUANTILES = (0.1, 0.5, 0.9)       # len(self.quantiles) == Q
MONOTONICITY_WEIGHT = 1.0


def _cdiv(a, b):
    return -(-a // b)


def _round_up(a, b):
    return _cdiv(a, b) * b


def _quantile_loss_kernel(aux_ref, preds_ref, targ_ref, pin_ref, mono_ref,
                          acc_pin, acc_mono):
    """aux_ref:   (3, W)  f32 VMEM  [q, q-1, mono_mask] per lane
       preds_ref: (TR, W)     VMEM  lane-dense flattened predictions
       targ_ref:  (TR, W)     VMEM  lane-dense Q-expanded target
       pin_ref, mono_ref: (1, 1) f32 SMEM scalar outputs (written on last step)
       acc_pin, acc_mono: (TR, W) f32 VMEM accumulators (persist across grid)."""
    step = pl.program_id(0)

    @pl.when(step == 0)
    def _init():
        acc_pin[...] = jnp.zeros_like(acc_pin)
        acc_mono[...] = jnp.zeros_like(acc_mono)

    p = preds_ref[...].astype(jnp.float32)      # (TR, W)
    t = targ_ref[...].astype(jnp.float32)       # (TR, W)
    coef_hi = aux_ref[0:1, :]                   # (1, W)  = q
    coef_lo = aux_ref[1:2, :]                   # (1, W)  = q - 1
    mask = aux_ref[2:3, :]                      # (1, W)  1 where lane%Q != Q-1

    # pinball: max((q-1)*e, q*e) for every element, all quantiles at once
    e = t - p
    acc_pin[...] += jnp.maximum(coef_lo * e, coef_hi * e)

    # monotonicity: relu(pred_q - pred_{q+1}); neighbor is the next lane.
    # Wrap-around lane (W-1) is always masked because W % Q == 0.
    p_next = jnp.concatenate([p[:, 1:], p[:, :1]], axis=1)
    acc_mono[...] += jnp.maximum((p - p_next) * mask, 0.0)

    @pl.when(step == pl.num_programs(0) - 1)
    def _finalize():
        pin_ref[0, 0] = jnp.sum(acc_pin[...])
        mono_ref[0, 0] = jnp.sum(acc_mono[...])


def quantile_loss(preds, target, quantiles=QUANTILES,
                  monotonicity_weight=MONOTONICITY_WEIGHT,
                  tile_bytes=2 * 1024 * 1024):
    """preds: (N, F*Q) (or anything reshapeable to N*F*Q); target: (N, F).
    Returns scalar f32 loss matching the PyTorch QuantileLoss.forward."""
    quantiles = tuple(float(q) for q in quantiles)
    Q = len(quantiles)
    N, F = target.shape
    G = F * Q
    total = N * G

    # lane-dense row width: multiple of 128 lanes AND of the group size F*Q,
    # so every row contains whole (feature, quantile) groups.
    W = (G * 128) // math.gcd(G, 128)
    R = _cdiv(total, W)                          # rows of real data

    # rows per tile: big lane-dense tiles, multiple of 8 sublanes
    TR = max(8, min((tile_bytes // (W * 4)) // 8 * 8, 1024))
    TR = max(8, min(TR, _round_up(R, 8)))
    R_pad = _round_up(R, TR)
    L = R_pad * W

    # glue: flatten preds; expand target along the quantile axis; zero-pad.
    preds_flat = preds.reshape(-1)
    targ_flat = jnp.broadcast_to(target.reshape(N * F, 1), (N * F, Q)).reshape(-1)
    pad = L - total
    if pad:
        preds_flat = jnp.concatenate(
            [preds_flat, jnp.zeros((pad,), preds_flat.dtype)])
        targ_flat = jnp.concatenate(
            [targ_flat, jnp.zeros((pad,), targ_flat.dtype)])
    preds2d = preds_flat.reshape(R_pad, W)
    targ2d = targ_flat.reshape(R_pad, W)

    # per-lane quantile coefficients + monotonicity mask (same for every row)
    idx = np.arange(W) % Q
    qv = np.asarray(quantiles, dtype=np.float32)
    aux = jnp.asarray(np.stack([qv[idx],
                                qv[idx] - 1.0,
                                (idx != Q - 1).astype(np.float32)], axis=0))

    grid = (R_pad // TR,)

    # TODO(synk): on v7x, split the row axis across the 2 TensorCores with
    # per-core partial-sum outputs (the shared accumulator here must stay on a
    # single "arbitrary" axis to avoid races).
    pin_sum, mono_sum = pl.pallas_call(
        _quantile_loss_kernel,
        out_shape=(jax.ShapeDtypeStruct((1, 1), jnp.float32),
                   jax.ShapeDtypeStruct((1, 1), jnp.float32)),
        grid_spec=pltpu.PrefetchScalarGridSpec(
            num_scalar_prefetch=0,
            grid=grid,
            in_specs=[
                pl.BlockSpec((3, W), lambda i: (0, 0)),      # aux constants
                pl.BlockSpec((TR, W), lambda i: (i, 0)),     # preds tile
                pl.BlockSpec((TR, W), lambda i: (i, 0)),     # target tile
            ],
            out_specs=[
                pl.BlockSpec(memory_space=pltpu.SMEM),
                pl.BlockSpec(memory_space=pltpu.SMEM),
            ],
            scratch_shapes=[pltpu.VMEM((TR, W), jnp.float32),
                            pltpu.VMEM((TR, W), jnp.float32)],
        ),
        compiler_params=pltpu.CompilerParams(
            dimension_semantics=("arbitrary",),      # accumulating across grid
            vmem_limit_bytes=48 * 1024 * 1024),
    )(aux, preds2d, targ2d)

    # Final normalization (cheap scalar glue):
    #   torch.stack(q_losses, -1).mean()  == pin_sum / (N*F*Q)
    #   sum_i mean(relu(diff_i))          == mono_sum / (N*F)
    pinball_mean = pin_sum[0, 0] / jnp.float32(N * F * Q)
    mono_mean = mono_sum[0, 0] / jnp.float32(N * F)
    return pinball_mean + jnp.float32(monotonicity_weight) * mono_mean


def quantile_loss_ref(preds, target, quantiles=QUANTILES,
                      monotonicity_weight=MONOTONICITY_WEIGHT):
    """Pure-JAX reference mirroring the PyTorch forward."""
    Q = len(quantiles)
    N, F = target.shape
    preds = preds.reshape(N, F, Q).astype(jnp.float32)
    target = target.astype(jnp.float32)[..., None]
    errors = target - preds
    q_losses = [jnp.maximum((q - 1.0) * errors[..., i], q * errors[..., i])
                for i, q in enumerate(quantiles)]
    mono = jnp.float32(0.0)
    for i in range(Q - 1):
        mono = mono + jnp.mean(jax.nn.relu(preds[..., i] - preds[..., i + 1]))
    loss = jnp.mean(jnp.stack(q_losses, axis=-1))
    return loss + monotonicity_weight * mono


if __name__ == "__main__":
    key = jax.random.PRNGKey(0)
    k1, k2 = jax.random.split(key)

    N, F, Q = 16, 4, len(QUANTILES)
    preds = jax.random.normal(k1, (N, F * Q), dtype=jnp.float32)   # model output
    target = jax.random.normal(k2, (N, F), dtype=jnp.float32)

    out = jax.block_until_ready(quantile_loss(preds, target))
    ref = jax.block_until_ready(quantile_loss_ref(preds, target))

    if not np.allclose(np.asarray(out), np.asarray(ref), rtol=1e-5, atol=1e-5):
        raise AssertionError(f"mismatch: kernel={out} ref={ref}")
    print("KERNEL_OK")
</pallas_src>

<mosaic_0001>
module attributes {stable_mosaic.version = 11 : i64} {
  func.func @_quantile_loss_kernel(%arg0: i32, %arg1: memref<3x384xf32, #tpu.memory_space<vmem>>, %arg2: memref<8x384xf32, #tpu.memory_space<vmem>>, %arg3: memref<8x384xf32, #tpu.memory_space<vmem>>, %arg4: memref<1x1xf32, #tpu.memory_space<smem>>, %arg5: memref<1x1xf32, #tpu.memory_space<smem>>, %arg6: memref<8x384xf32, #tpu.memory_space<vmem>>, %arg7: memref<8x384xf32, #tpu.memory_space<vmem>>) attributes {dimension_semantics = [#tpu.dimension_semantics<arbitrary>], iteration_bounds = array<i64: 1>, scalar_prefetch = 0 : i64, scratch_operands = 2 : i64, tpu.core_type = #tpu.core_type<tc>, window_params = [{pipeline_mode = #tpu.pipeline_mode<synchronous>, transform_indices = @transform_0, window_bounds = array<i64: 3, 384>}, {transform_indices = @transform_1, window_bounds = array<i64: 8, 384>}, {transform_indices = @transform_2, window_bounds = array<i64: 8, 384>}, {transform_indices = @transform_3, window_bounds = array<i64: 1, 1>}, {transform_indices = @transform_4, window_bounds = array<i64: 1, 1>}]} {
    %c0_i32 = arith.constant 0 : i32
    %0 = arith.cmpi eq, %arg0, %c0_i32 : i32
    %1 = arith.extui %0 : i1 to i32
    %c0_i32_0 = arith.constant 0 : i32
    %2 = arith.cmpi ne, %1, %c0_i32_0 : i32
    scf.if %2 {
      %cst_18 = arith.constant 0.000000e+00 : f32
      %31 = vector.broadcast %cst_18 : f32 to vector<8x384xf32>
      %c0_19 = arith.constant 0 : index
      %c0_20 = arith.constant 0 : index
      %32 = vector.load %arg6[%c0_19, %c0_20] : memref<8x384xf32, #tpu.memory_space<vmem>>, vector<8x384xf32>
      tpu.vector_store %arg6[%c0_19, %c0_20], %31 {strides = array<i32>} : memref<8x384xf32, #tpu.memory_space<vmem>>, vector<8x384xf32>,
      %cst_21 = arith.constant 0.000000e+00 : f32
      %33 = vector.broadcast %cst_21 : f32 to vector<8x384xf32>
      %c0_22 = arith.constant 0 : index
      %c0_23 = arith.constant 0 : index
      %34 = vector.load %arg7[%c0_22, %c0_23] : memref<8x384xf32, #tpu.memory_space<vmem>>, vector<8x384xf32>
      tpu.vector_store %arg7[%c0_22, %c0_23], %33 {strides = array<i32>} : memref<8x384xf32, #tpu.memory_space<vmem>>, vector<8x384xf32>,
    } else {
    }
    %c0 = arith.constant 0 : index
    %c0_1 = arith.constant 0 : index
    %3 = vector.load %arg2[%c0, %c0_1] : memref<8x384xf32, #tpu.memory_space<vmem>>, vector<8x384xf32>
    %c0_2 = arith.constant 0 : index
    %c0_3 = arith.constant 0 : index
    %4 = vector.load %arg3[%c0_2, %c0_3] : memref<8x384xf32, #tpu.memory_space<vmem>>, vector<8x384xf32>
    %c0_4 = arith.constant 0 : index
    %c0_5 = arith.constant 0 : index
    %5 = vector.load %arg1[%c0_4, %c0_5] : memref<3x384xf32, #tpu.memory_space<vmem>>, vector<1x384xf32>
    %c1 = arith.constant 1 : index
    %c0_6 = arith.constant 0 : index
    %6 = vector.load %arg1[%c1, %c0_6] : memref<3x384xf32, #tpu.memory_space<vmem>>, vector<1x384xf32>
    %c2 = arith.constant 2 : index
    %c0_7 = arith.constant 0 : index
    %7 = vector.load %arg1[%c2, %c0_7] : memref<3x384xf32, #tpu.memory_space<vmem>>, vector<1x384xf32>
    %8 = arith.subf %4, %3 : vector<8x384xf32>
    %c0_8 = arith.constant 0 : index
    %c0_9 = arith.constant 0 : index
    %9 = vector.load %arg6[%c0_8, %c0_9] : memref<8x384xf32, #tpu.memory_space<vmem>>, vector<8x384xf32>
    %10 = vector.broadcast %6 : vector<1x384xf32> to vector<8x384xf32>
    %11 = arith.mulf %10, %8 : vector<8x384xf32>
    %12 = vector.broadcast %5 : vector<1x384xf32> to vector<8x384xf32>
    %13 = arith.mulf %12, %8 : vector<8x384xf32>
    %14 = arith.maximumf %11, %13 : vector<8x384xf32>
    %15 = arith.addf %9, %14 : vector<8x384xf32>
    %c0_10 = arith.constant 0 : index
    %c0_11 = arith.constant 0 : index
    %16 = vector.load %arg6[%c0_10, %c0_11] : memref<8x384xf32, #tpu.memory_space<vmem>>, vector<8x384xf32>
    tpu.vector_store %arg6[%c0_10, %c0_11], %15 {strides = array<i32>} : memref<8x384xf32, #tpu.memory_space<vmem>>, vector<8x384xf32>,
    %17 = vector.extract_strided_slice %3 {offsets = [0, 1], sizes = [8, 383], strides = [1, 1]} : vector<8x384xf32> to vector<8x383xf32>
    %18 = vector.extract_strided_slice %3 {offsets = [0, 0], sizes = [8, 1], strides = [1, 1]} : vector<8x384xf32> to vector<8x1xf32>
    %19 = tpu.concatenate %17, %18 in 1 : vector<8x383xf32>, vector<8x1xf32> -> vector<8x384xf32>
    %c0_12 = arith.constant 0 : index
    %c0_13 = arith.constant 0 : index
    %20 = vector.load %arg7[%c0_12, %c0_13] : memref<8x384xf32, #tpu.memory_space<vmem>>, vector<8x384xf32>
    %21 = arith.subf %3, %19 : vector<8x384xf32>
    %22 = vector.broadcast %7 : vector<1x384xf32> to vector<8x384xf32>
    %23 = arith.mulf %21, %22 : vector<8x384xf32>
    %cst = arith.constant 0.000000e+00 : f32
    %24 = vector.broadcast %cst : f32 to vector<8x384xf32>
    %25 = arith.maximumf %23, %24 : vector<8x384xf32>
    %26 = arith.addf %20, %25 : vector<8x384xf32>
    %c0_14 = arith.constant 0 : index
    %c0_15 = arith.constant 0 : index
    %27 = vector.load %arg7[%c0_14, %c0_15] : memref<8x384xf32, #tpu.memory_space<vmem>>, vector<8x384xf32>
    tpu.vector_store %arg7[%c0_14, %c0_15], %26 {strides = array<i32>} : memref<8x384xf32, #tpu.memory_space<vmem>>, vector<8x384xf32>,
    %c0_i32_16 = arith.constant 0 : i32
    %28 = arith.cmpi eq, %arg0, %c0_i32_16 : i32
    %29 = arith.extui %28 : i1 to i32
    %c0_i32_17 = arith.constant 0 : i32
    %30 = arith.cmpi ne, %29, %c0_i32_17 : i32
    scf.if %30 {
      %c0_18 = arith.constant 0 : index
      %c0_19 = arith.constant 0 : index
      %31 = vector.load %arg6[%c0_18, %c0_19] : memref<8x384xf32, #tpu.memory_space<vmem>>, vector<8x384xf32>
      %32 = vector.shape_cast %31 : vector<8x384xf32> to vector<1x8x384xf32>
      %cst_20 = arith.constant dense<0.000000e+00> : vector<1xf32>
      %33 = vector.multi_reduction <add>, %32, %cst_20 [1, 2] : vector<1x8x384xf32> to vector<1xf32>
      %34 = vector.shape_cast %33 : vector<1xf32> to vector<1x1x1xf32>
      %35 = vector.extract %34[0, 0, 0] : f32 from vector<1x1x1xf32>
      %c0_21 = arith.constant 0 : index
      %c0_22 = arith.constant 0 : index
      %36 = memref.load %arg4[%c0_21, %c0_22] : memref<1x1xf32, #tpu.memory_space<smem>>
      memref.store %35, %arg4[%c0_21, %c0_22] : memref<1x1xf32, #tpu.memory_space<smem>>
      %c0_23 = arith.constant 0 : index
      %c0_24 = arith.constant 0 : index
      %37 = vector.load %arg7[%c0_23, %c0_24] : memref<8x384xf32, #tpu.memory_space<vmem>>, vector<8x384xf32>
      %38 = vector.shape_cast %37 : vector<8x384xf32> to vector<1x8x384xf32>
      %cst_25 = arith.constant dense<0.000000e+00> : vector<1xf32>
      %39 = vector.multi_reduction <add>, %38, %cst_25 [1, 2] : vector<1x8x384xf32> to vector<1xf32>
      %40 = vector.shape_cast %39 : vector<1xf32> to vector<1x1x1xf32>
      %41 = vector.extract %40[0, 0, 0] : f32 from vector<1x1x1xf32>
      %c0_26 = arith.constant 0 : index
      %c0_27 = arith.constant 0 : index
      %42 = memref.load %arg5[%c0_26, %c0_27] : memref<1x1xf32, #tpu.memory_space<smem>>
      memref.store %41, %arg5[%c0_26, %c0_27] : memref<1x1xf32, #tpu.memory_space<smem>>
    } else {
    }
    return
  }
  func.func @transform_0(%arg0: i32) -> (i32, i32) {
    %c0_i32 = arith.constant 0 : i32
    %c0_i32_0 = arith.constant 0 : i32
    %c0_i32_1 = arith.constant 0 : i32
    return %c0_i32, %c0_i32_0 : i32, i32
  }
  func.func @transform_1(%arg0: i32) -> (i32, i32) {
    %c0_i32 = arith.constant 0 : i32
    %c0_i32_0 = arith.constant 0 : i32
    return %arg0, %c0_i32 : i32, i32
  }
  func.func @transform_2(%arg0: i32) -> (i32, i32) {
    %c0_i32 = arith.constant 0 : i32
    %c0_i32_0 = arith.constant 0 : i32
    return %arg0, %c0_i32 : i32, i32
  }
  func.func @transform_3(%arg0: i32) -> (i32, i32) {
    %c0_i32 = arith.constant 0 : i32
    %c0_i32_0 = arith.constant 0 : i32
    %c0_i32_1 = arith.constant 0 : i32
    return %c0_i32, %c0_i32_0 : i32, i32
  }
  func.func @transform_4(%arg0: i32) -> (i32, i32) {
    %c0_i32 = arith.constant 0 : i32
    %c0_i32_0 = arith.constant 0 : i32
    %c0_i32_1 = arith.constant 0 : i32
    return %c0_i32, %c0_i32_0 : i32, i32
  }
}

</mosaic_0001>

<llo_original>
// kernel: tpu_custom_call.1
$region0: #{tpu_custom_call.1}
  #allocation0 [shape = 'u32[]', space=smem, size = 0x4, offset = 0x4, fixed_abs, tag = 'smem constant byte address 0x4 - core index']
  #allocation1 [shape = 'u32[144,128]{1,0:T(1,128)}', space=vmem, size = 0x12000, scoped, tag = 'internal scratch']
  #allocation2 [shape = 'f32[8,384]{1,0:T(8,128)}', space=vmem, size = 0x3000, scoped, tag = 'scratch operand']
  #allocation3 [shape = 'f32[8,384]{1,0:T(8,128)}', space=vmem, size = 0x3000, scoped, tag = 'scratch operand']
  %s0 = inlined_call_operand.hbm [shape: f32[3,384], index: 0, kind: input, shape index: {}]
  %s1 = inlined_call_operand.hbm [shape: f32[8,384], index: 1, kind: input, shape index: {}]
  %s2 = inlined_call_operand.hbm [shape: f32[8,384], index: 2, kind: input, shape index: {}]
  %s3 = inlined_call_operand.hbm [shape: f32[1,1], index: 3, kind: output, shape index: {0}]
  %s4 = inlined_call_operand.hbm [shape: f32[1,1], index: 4, kind: output, shape index: {1}]
  %5 = xla_tuple %s3, %s4
  %s6 = sld [smem:[#allocation0]]
  $region50: #{tpu_custom_call.1} parent=0
    _
  %s8 = ssub.s32 1, %s6
  %s9 = scalar_select 0, %s8, %s6
  $region1: #{tpu_custom_call.1} parent=0
    #allocation4 [shape = 'u8[6144]{0}', space=vmem, size = 0x1800, scoped, tag = 'input window, operand 0, single buffered']
    #allocation5 [shape = 's32[1]{0}', space=sflag, size = 0x4, scoped, tag = 'scoped memory for tpu_custom_call.1']
    #allocation6 [shape = 's32[1]{0}', space=sflag, size = 0x4, scoped, tag = 'scoped memory for tpu_custom_call.1']
    #allocation7 [shape = 'u8[12288]{0}', space=vmem, size = 0x3000, scoped, tag = 'input window, operand 1, single buffered']
    #allocation8 [shape = 's32[1]{0}', space=sflag, size = 0x4, scoped, tag = 'scoped memory for tpu_custom_call.1']
    #allocation9 [shape = 'u8[12288]{0}', space=vmem, size = 0x3000, scoped, tag = 'input window, operand 2, single buffered']
    #allocation10 [shape = 'u8[512]{0}', space=smem, size = 0x200, scoped, tag = 'output window, operand 0, single buffered']
    #allocation11 [shape = 'u8[512]{0}', space=smem, size = 0x200, scoped, tag = 'output window, operand 1, single buffered']
    #allocation12 [shape = 's32[1]{0}', space=sflag, size = 0x4, scoped, tag = 'scoped memory for tpu_custom_call.1']
    %10 = vsyncpa [#allocation5], 0
    %11 = vsyncpa [#allocation8], 0
    %12 = vsyncpa [#allocation6], 0
    %13 = vsyncpa [#allocation12], 0
    // Predicated region
    $region2: #{tpu_custom_call.1} parent=1 // pred_check
      _
    $region3: #{tpu_custom_call.1} parent=1 // pred_check_branch
      %15 = sbr.rel (0) target = $region5
    $region4: #{tpu_custom_call.1} parent=1 // pred_region
      %s17 = ssub.s32 192, 192
      %18 = vsyncadd [#allocation5], %s17
      %s20 = sshll.u32 [#allocation4], 4
      %s21 = int_to_ptr.vmem [resolvable:$true] %s20
      %23 = dma.hbm_to_vmem [thread:$0]  %s0, 192, %s21, [#allocation5]
    $region5: #{tpu_custom_call.1} parent=1 // pred_fallthru
      _
    // Predicated region
    $region6: #{tpu_custom_call.1} parent=1 // pred_check
      _
    $region7: #{tpu_custom_call.1} parent=1 // pred_check_branch
      %25 = sbr.rel (0) target = $region9
    $region8: #{tpu_custom_call.1} parent=1 // pred_region
      %s27 = ssub.s32 384, 384
      %28 = vsyncadd [#allocation8], %s27
      %s30 = sshll.u32 [#allocation7], 4
      %s31 = int_to_ptr.vmem [resolvable:$true] %s30
      %33 = dma.hbm_to_vmem [thread:$0]  %s1, 384, %s31, [#allocation8]
    $region9: #{tpu_custom_call.1} parent=1 // pred_fallthru
      _
    // Predicated region
    $region10: #{tpu_custom_call.1} parent=1 // pred_check
      _
    $region11: #{tpu_custom_call.1} parent=1 // pred_check_branch
      %35 = sbr.rel (0) target = $region13
    $region12: #{tpu_custom_call.1} parent=1 // pred_region
      %s37 = ssub.s32 384, 384
      %38 = vsyncadd [#allocation8], %s37
      %s40 = sshll.u32 [#allocation9], 4
      %s41 = int_to_ptr.vmem [resolvable:$true] %s40
      %43 = dma.hbm_to_vmem [thread:$0]  %s2, 384, %s41, [#allocation8]
    $region13: #{tpu_custom_call.1} parent=1 // pred_fallthru
      _
    // Predicated region
    $region14: #{tpu_custom_call.1} parent=1 // pred_check
      _
    $region15: #{tpu_custom_call.1} parent=1 // pred_check_branch
      %45 = sbr.rel (0) target = $region17
    $region16: #{tpu_custom_call.1} parent=1 // pred_region
      %46 = dma.done [#allocation5], 192
    $region17: #{tpu_custom_call.1} parent=1 // pred_fallthru
      _
    // Predicated region
    $region18: #{tpu_custom_call.1} parent=1 // pred_check
      _
    $region19: #{tpu_custom_call.1} parent=1 // pred_check_branch
      %48 = sbr.rel (0) target = $region21
    $region20: #{tpu_custom_call.1} parent=1 // pred_region
      %49 = dma.done [#allocation8], 384
    $region21: #{tpu_custom_call.1} parent=1 // pred_fallthru
      _
    // Predicated region
    $region22: #{tpu_custom_call.1} parent=1 // pred_check
      _
    $region23: #{tpu_custom_call.1} parent=1 // pred_check_branch
      %51 = sbr.rel (0) target = $region25
    $region24: #{tpu_custom_call.1} parent=1 // pred_region
      %52 = dma.done [#allocation8], 384
    $region25: #{tpu_custom_call.1} parent=1 // pred_fallthru
      _
    %p53 = scmp.eq.s32.totalorder 0, 0
    // Predicated region
    $region26: #{tpu_custom_call.1} parent=1 // pred_check
      %p54 = pneg %p53
    $region27: #{tpu_custom_call.1} parent=1 // pred_check_branch
      %56 = sbr.rel (%p54) target = $region29
    $region28: #{tpu_custom_call.1} parent=1 // pred_region
      %57 = vst [vmem:[#allocation2] sm:$0xff] 0.0
      %58 = vst [vmem:[#allocation2 + $0x8] sm:$0xff] 0.0
      %59 = vst [vmem:[#allocation2 + $0x10] sm:$0xff] 0.0
      %60 = vst [vmem:[#allocation3] sm:$0xff] 0.0
      %61 = vst [vmem:[#allocation3 + $0x8] sm:$0xff] 0.0
      %62 = vst [vmem:[#allocation3 + $0x10] sm:$0xff] 0.0
    $region29: #{tpu_custom_call.1} parent=1 // pred_fallthru
      _
    %v63 = vld [vmem:[#allocation7] sm:$0xff]
    %v64 = vld [vmem:[#allocation7 + $0x8] sm:$0xff]
    %v65 = vld [vmem:[#allocation7 + $0x10] sm:$0xff]
    %v66 = vld [vmem:[#allocation9] sm:$0xff]
    %v67 = vld [vmem:[#allocation9 + $0x8] sm:$0xff]
    %v68 = vld [vmem:[#allocation9 + $0x10] sm:$0xff]
    %v69 = vld [vmem:[#allocation4] ss:$4 sm:$0x7]
    %s70 = scalar_lea.vmem [#allocation4], 1
    %v71 = vld [vmem:[%s70] ss:$4 sm:$0x7]
    %s72 = scalar_lea.vmem [#allocation4], 2
    %v73 = vld [vmem:[%s72] ss:$4 sm:$0x7]
    %v74 = vsub.f32 %v66, %v63
    %v75 = vsub.f32 %v67, %v64
    %v76 = vsub.f32 %v68, %v65
    %v77 = vld [vmem:[#allocation2] sm:$0xff]
    %v78 = vld [vmem:[#allocation2 + $0x8] sm:$0xff]
    %v79 = vld [vmem:[#allocation2 + $0x10] sm:$0xff]
    %v81 = vlaneseq
    %v82 = vshrl.u32 %v81, 7
    %v83 = vsub.s32 0, %v82
    %v84 = vrot.slane %v71, %v83
    %v85 = vlaneseq
    %v86 = vshrl.u32 %v85, 7
    %v87 = vsub.s32 1, %v86
    %v88 = vrot.slane %v71, %v87
    %v89 = vlaneseq
    %v90 = vshrl.u32 %v89, 7
    %v91 = vsub.s32 2, %v90
    %v92 = vrot.slane %v71, %v91
    %v96 = vmul.f32 %v84, %v74
    %v97 = vmul.f32 %v88, %v75
    %v98 = vmul.f32 %v92, %v76
    %v100 = vlaneseq
    %v101 = vshrl.u32 %v100, 7
    %v102 = vsub.s32 0, %v101
    %v103 = vrot.slane %v69, %v102
    %v104 = vlaneseq
    %v105 = vshrl.u32 %v104, 7
    %v106 = vsub.s32 1, %v105
    %v107 = vrot.slane %v69, %v106
    %v108 = vlaneseq
    %v109 = vshrl.u32 %v108, 7
    %v110 = vsub.s32 2, %v109
    %v111 = vrot.slane %v69, %v110
    %v115 = vmul.f32 %v103, %v74
    %v116 = vmul.f32 %v107, %v75
    %v117 = vmul.f32 %v111, %v76
    %v118 = vmax.f32 %v96, %v115
    %v119 = vmax.f32 %v97, %v116
    %v120 = vmax.f32 %v98, %v117
    %v121 = vadd.f32 %v77, %v118
    %v122 = vadd.f32 %v78, %v119
    %v123 = vadd.f32 %v79, %v120
    %124 = vst [vmem:[#allocation2] sm:$0xff] %v121
    %125 = vst [vmem:[#allocation2 + $0x8] sm:$0xff] %v122
    %126 = vst [vmem:[#allocation2 + $0x10] sm:$0xff] %v123
    %130 = vrot.lane.b32.xlu0 %v63, 127
    %v131 = vpop.permute.xlu0 %130
    %132 = vrot.lane.b32.xlu0 %v64, 127
    %v133 = vpop.permute.xlu0 %132
    %134 = vrot.lane.b32.xlu0 %v65, 127
    %v135 = vpop.permute.xlu0 %134
    %vm136 = vcmask 1039360
    %v137 = vsel %vm136, %v131, %v133
    %v138 = vsel %vm136, %v133, %v135
    %v143 = vsel %vm136, %v135, %v131
    %v144 = vld [vmem:[#allocation3] sm:$0xff]
    %v145 = vld [vmem:[#allocation3 + $0x8] sm:$0xff]
    %v146 = vld [vmem:[#allocation3 + $0x10] sm:$0xff]
    %v147 = vsub.f32 %v63, %v137
    %v148 = vsub.f32 %v64, %v138
    %v149 = vsub.f32 %v65, %v143
    %v151 = vlaneseq
    %v152 = vshrl.u32 %v151, 7
    %v153 = vsub.s32 0, %v152
    %v154 = vrot.slane %v73, %v153
    %v155 = vlaneseq
    %v156 = vshrl.u32 %v155, 7
    %v157 = vsub.s32 1, %v156
    %v158 = vrot.slane %v73, %v157
    %v159 = vlaneseq
    %v160 = vshrl.u32 %v159, 7
    %v161 = vsub.s32 2, %v160
    %v162 = vrot.slane %v73, %v161
    %v166 = vmul.f32 %v147, %v154
    %v167 = vmul.f32 %v148, %v158
    %v168 = vmul.f32 %v149, %v162
    %v169 = vmax.f32 %v166, 0.0
    %v170 = vmax.f32 %v167, 0.0
    %v171 = vmax.f32 %v168, 0.0
    %v172 = vadd.f32 %v144, %v169
    %v173 = vadd.f32 %v145, %v170
    %v174 = vadd.f32 %v146, %v171
    %175 = vst [vmem:[#allocation3] sm:$0xff] %v172
    %176 = vst [vmem:[#allocation3 + $0x8] sm:$0xff] %v173
    %177 = vst [vmem:[#allocation3 + $0x10] sm:$0xff] %v174
    // Predicated region
    $region30: #{tpu_custom_call.1} parent=1 // pred_check
      %p178 = pneg %p53
    $region31: #{tpu_custom_call.1} parent=1 // pred_check_branch
      %180 = sbr.rel (%p178) target = $region33
    $region32: #{tpu_custom_call.1} parent=1 // pred_region
      %v181 = vld [vmem:[#allocation2] sm:$0xff]
      %v182 = vld [vmem:[#allocation2 + $0x8] sm:$0xff]
      %v183 = vld [vmem:[#allocation2 + $0x10] sm:$0xff]
      %v184 = vadd.f32 %v181, %v182
      %v185 = vadd.f32 %v184, %v183
      %186 = vadd.xlane.f32.xlu0 %v185
      %v187 = vpop.xlane.xlu0 %186
      %v188 = vrot.slane %v187, 4
      %v189 = vadd.f32 %v187, %v188
      %v190 = vrot.slane %v189, 2
      %v191 = vadd.f32 %v189, %v190
      %v192 = vrot.slane %v191, 1
      %v193 = vadd.f32 %v191, %v192
      %s194 = vtos %v193
      %s195 = scalar_lea.smem [#allocation10], 0
      %196 = sst [smem:[%s195]] %s194
      %v197 = vld [vmem:[#allocation3] sm:$0xff]
      %v198 = vld [vmem:[#allocation3 + $0x8] sm:$0xff]
      %v199 = vld [vmem:[#allocation3 + $0x10] sm:$0xff]
      %v200 = vadd.f32 %v197, %v198
      %v201 = vadd.f32 %v200, %v199
      %202 = vadd.xlane.f32.xlu0 %v201
      %v203 = vpop.xlane.xlu0 %202
      %v204 = vrot.slane %v203, 4
      %v205 = vadd.f32 %v203, %v204
      %v206 = vrot.slane %v205, 2
      %v207 = vadd.f32 %v205, %v206
      %v208 = vrot.slane %v207, 1
      %v209 = vadd.f32 %v207, %v208
      %s210 = vtos %v209
      %s211 = scalar_lea.smem [#allocation11], 0
      %212 = sst [smem:[%s211]] %s210
    $region33: #{tpu_custom_call.1} parent=1 // pred_fallthru
      _
    // Predicated region
    $region34: #{tpu_custom_call.1} parent=1 // pred_check
      _
    $region35: #{tpu_custom_call.1} parent=1 // pred_check_branch
      %214 = sbr.rel (0) target = $region37
    $region36: #{tpu_custom_call.1} parent=1 // pred_region
      %s216 = ssub.s32 16, 16
      %217 = vsyncadd [#allocation6], %s216
      %220 = dma.smem_to_hbm [#allocation10], 16, %s3, [#allocation6]
    $region37: #{tpu_custom_call.1} parent=1 // pred_fallthru
      _
    // Predicated region
    $region38: #{tpu_custom_call.1} parent=1 // pred_check
      _
    $region39: #{tpu_custom_call.1} parent=1 // pred_check_branch
      %222 = sbr.rel (0) target = $region41
    $region40: #{tpu_custom_call.1} parent=1 // pred_region
      %s224 = ssub.s32 16, 16
      %225 = vsyncadd [#allocation12], %s224
      %228 = dma.smem_to_hbm [#allocation11], 16, %s4, [#allocation12]
    $region41: #{tpu_custom_call.1} parent=1 // pred_fallthru
      _
    // Predicated region
    $region42: #{tpu_custom_call.1} parent=1 // pred_check
      _
    $region43: #{tpu_custom_call.1} parent=1 // pred_check_branch
      %230 = sbr.rel (0) target = $region45
    $region44: #{tpu_custom_call.1} parent=1 // pred_region
      %231 = dma.done [#allocation6], 16
    $region45: #{tpu_custom_call.1} parent=1 // pred_fallthru
      _
    // Predicated region
    $region46: #{tpu_custom_call.1} parent=1 // pred_check
      _
    $region47: #{tpu_custom_call.1} parent=1 // pred_check_branch
      %233 = sbr.rel (0) target = $region49
    $region48: #{tpu_custom_call.1} parent=1 // pred_region
      %234 = dma.done [#allocation12], 16
    $region49: #{tpu_custom_call.1} parent=1 // pred_fallthru
      _
    %235 = sfence
    %236 = vsyncpa [#allocation5], 1
    %237 = vsyncpa [#allocation8], 1
    %238 = vsyncpa [#allocation6], 1
    %239 = vsyncpa [#allocation12], 1

</llo_original>
